<compile_context>
chip_gen: v6e
topology: v6e:2x2x1
jax: 0.10.0
libtpu: 0.0.40
codegen_flags: <defaults>
</compile_context>

<pallas_src>
import functools

import jax
import jax.numpy as jnp
from jax.experimental import pallas as pl
from jax.experimental.pallas import tpu as pltpu


def _round_up(x, m):
    return ((x + m - 1) // m) * m


def _loss_kernel(y_ref, d_ref, w_ref, out_ref, acc_ref):
    j = pl.program_id(1)

    @pl.when(j == 0)
    def _():
        acc_ref[...] = jnp.zeros_like(acc_ref)

    y = y_ref[...].astype(jnp.float32)
    d = d_ref[...].astype(jnp.float32)
    w = w_ref[...].astype(jnp.float32)            # (row_tile, 1) per-row channel weights

    # Stable BCE-with-logits:  softplus(x) = max(x, 0) + log(1 + exp(-|x|))
    #   -log(sigmoid(y))     = softplus(-y)
    #   -log(1 - sigmoid(y)) = softplus(y)
    t = jnp.log(1.0 + jnp.exp(-jnp.abs(y)))       # 1 exp + 1 log per element (EUP)
    sp_neg = jnp.maximum(-y, 0.0) + t
    sp_pos = jnp.maximum(y, 0.0) + t
    # PyTorch BCELoss clamps each log term at -100.
    bce = d * jnp.minimum(sp_neg, 100.0) + (1.0 - d) * jnp.minimum(sp_pos, 100.0)

    acc_ref[...] += bce * w                       # elementwise VPU accumulate

    @pl.when(j == pl.num_programs(1) - 1)
    def _():
        total = jnp.sum(acc_ref[...])             # one cross-lane reduce per row tile
        r = jax.lax.broadcasted_iota(jnp.int32, (1, 8, 128), 1)
        c = jax.lax.broadcasted_iota(jnp.int32, (1, 8, 128), 2)
        out_ref[...] = jnp.where((r == 0) & (c == 0), total, 0.0)


def eqt_loss(y, d, weights=(0.4, 0.5, 0.1), row_tile=256, col_tile=1024):
    """y, d: (B, C, T) float arrays (f32 or bf16). Returns scalar float32 loss."""
    B, C, T = y.shape
    assert d.shape == (B, C, T)
    assert len(weights) == C
    assert row_tile % 8 == 0 and col_tile % 128 == 0

    R = B * C
    y2 = y.reshape(R, T)
    d2 = d.reshape(R, T)

    row_tile = min(row_tile, _round_up(R, 8))
    col_tile = min(col_tile, _round_up(T, 128))
    pad_R = _round_up(R, row_tile)
    pad_T = _round_up(T, col_tile)
    if (pad_R, pad_T) != (R, T):
        # Pad with (y=-100, d=0): BCE of that pair is exactly 0, so padding
        # never contributes to the sum and no in-kernel masking is needed.
        y2 = jnp.pad(y2, ((0, pad_R - R), (0, pad_T - T)), constant_values=-100.0)
        d2 = jnp.pad(d2, ((0, pad_R - R), (0, pad_T - T)), constant_values=0.0)

    # Per-row weight column: row r of the flattened (B*C, T) layout has channel
    # r % C -> pattern [w0, w1, w2] repeated B times; padded rows get weight 0.
    w_rows = jnp.tile(jnp.asarray(weights, dtype=jnp.float32), B)
    w_rows = jnp.pad(w_rows, (0, pad_R - R)).reshape(pad_R, 1)

    n_i = pad_R // row_tile
    n_j = pad_T // col_tile
    itemsize = jnp.dtype(y.dtype).itemsize

    partials = pl.pallas_call(
        _loss_kernel,
        out_shape=jax.ShapeDtypeStruct((n_i, 8, 128), jnp.float32),
        grid_spec=pltpu.PrefetchScalarGridSpec(
            num_scalar_prefetch=0,
            grid=(n_i, n_j),
            in_specs=[
                pl.BlockSpec((row_tile, col_tile), lambda i, j: (i, j)),   # y
                pl.BlockSpec((row_tile, col_tile), lambda i, j: (i, j)),   # d
                pl.BlockSpec((row_tile, 1), lambda i, j: (i, 0)),          # per-row weights
            ],
            out_specs=pl.BlockSpec((1, 8, 128), lambda i, j: (i, 0, 0)),
            scratch_shapes=[pltpu.VMEM((row_tile, col_tile), jnp.float32)],
        ),
        compiler_params=pltpu.CompilerParams(
            dimension_semantics=("parallel", "arbitrary"),
        ),
        cost_estimate=pl.CostEstimate(
            flops=14 * pad_R * pad_T,
            transcendentals=2 * pad_R * pad_T,
            bytes_accessed=2 * pad_R * pad_T * itemsize,
        ),
    )(y2, d2, w_rows)

    return jnp.sum(partials)


def _reference_loss(y, d, weight):
    # Exact PyTorch formulation: sigmoid -> BCELoss (logs clamped at -100) -> weighted sum.
    p = jax.nn.sigmoid(y.astype(jnp.float32))
    log_p = jnp.maximum(jnp.log(p), -100.0)
    log_1mp = jnp.maximum(jnp.log(1.0 - p), -100.0)
    bce = -(d * log_p + (1.0 - d) * log_1mp)
    return jnp.sum(bce * weight)


if __name__ == "__main__":
    weight = jnp.array([0.4, 0.5, 0.1], dtype=jnp.float32).reshape(1, 3, 1)
    key = jax.random.PRNGKey(0)
    ky, kd, ky2, kd2 = jax.random.split(key, 4)

    # Small shape (single-tile path with row/col padding).
    B, C, T = 2, 3, 16
    y = jax.random.normal(ky, (B, C, T), dtype=jnp.float32)        # raw logits
    d = jax.random.uniform(kd, (B, C, T), dtype=jnp.float32)       # targets in [0, 1]
    loss = jax.block_until_ready(eqt_loss(y, d))
    ref = _reference_loss(y, d, weight)
    assert jnp.allclose(loss, ref, rtol=1e-4, atol=1e-4), (loss, ref)

    # Slightly larger shape forcing a multi-tile grid (2 row tiles x 3 col tiles)
    # to exercise the pipelined accumulation / finalize / parallel-axis path.
    B2, T2 = 4, 300
    y_big = jax.random.normal(ky2, (B2, C, T2), dtype=jnp.float32)
    d_big = jax.random.uniform(kd2, (B2, C, T2), dtype=jnp.float32)
    loss_big = jax.block_until_ready(eqt_loss(y_big, d_big, row_tile=8, col_tile=128))
    ref_big = _reference_loss(y_big, d_big, weight)
    assert jnp.allclose(loss_big, ref_big, rtol=1e-4, atol=1e-4), (loss_big, ref_big)

    print("KERNEL_OK")
</pallas_src>

<mosaic_0001>
module attributes {stable_mosaic.version = 11 : i64} {
  func.func @_loss_kernel(%arg0: i32, %arg1: i32, %arg2: memref<8x128xf32, #tpu.memory_space<vmem>>, %arg3: memref<8x128xf32, #tpu.memory_space<vmem>>, %arg4: memref<8x1xf32, #tpu.memory_space<vmem>>, %arg5: memref<1x8x128xf32, #tpu.memory_space<vmem>>, %arg6: memref<8x128xf32, #tpu.memory_space<vmem>>) attributes {dimension_semantics = [#tpu.dimension_semantics<parallel>, #tpu.dimension_semantics<arbitrary>], iteration_bounds = array<i64: 1, 1>, scalar_prefetch = 0 : i64, scratch_operands = 1 : i64, tpu.core_type = #tpu.core_type<tc>, window_params = [{transform_indices = @transform_0, window_bounds = array<i64: 8, 128>}, {transform_indices = @transform_1, window_bounds = array<i64: 8, 128>}, {transform_indices = @transform_2, window_bounds = array<i64: 8, 1>}, {transform_indices = @transform_3, window_bounds = array<i64: 1, 8, 128>}]} {
    %c0_i32 = arith.constant 0 : i32
    %0 = arith.cmpi eq, %arg1, %c0_i32 : i32
    %1 = arith.extui %0 : i1 to i32
    %c0_i32_0 = arith.constant 0 : i32
    %2 = arith.cmpi ne, %1, %c0_i32_0 : i32
    scf.if %2 {
      %cst_19 = arith.constant 0.000000e+00 : f32
      %38 = vector.broadcast %cst_19 : f32 to vector<8x128xf32>
      %c0_20 = arith.constant 0 : index
      %c0_21 = arith.constant 0 : index
      %39 = vector.load %arg6[%c0_20, %c0_21] : memref<8x128xf32, #tpu.memory_space<vmem>>, vector<8x128xf32>
      tpu.vector_store %arg6[%c0_20, %c0_21], %38 {strides = array<i32>} : memref<8x128xf32, #tpu.memory_space<vmem>>, vector<8x128xf32>,
    } else {
    }
    %c0 = arith.constant 0 : index
    %c0_1 = arith.constant 0 : index
    %3 = vector.load %arg2[%c0, %c0_1] : memref<8x128xf32, #tpu.memory_space<vmem>>, vector<8x128xf32>
    %c0_2 = arith.constant 0 : index
    %c0_3 = arith.constant 0 : index
    %4 = vector.load %arg3[%c0_2, %c0_3] : memref<8x128xf32, #tpu.memory_space<vmem>>, vector<8x128xf32>
    %c0_4 = arith.constant 0 : index
    %c0_5 = arith.constant 0 : index
    %5 = vector.load %arg4[%c0_4, %c0_5] : memref<8x1xf32, #tpu.memory_space<vmem>>, vector<8x1xf32>
    %6 = math.absf %3 : vector<8x128xf32>
    %cst = arith.constant 0.000000e+00 : f32
    %7 = vector.broadcast %cst : f32 to vector<8x128xf32>
    %8 = arith.subf %7, %6 : vector<8x128xf32>
    %9 = math.exp %8 : vector<8x128xf32>
    %cst_6 = arith.constant 1.000000e+00 : f32
    %10 = vector.broadcast %cst_6 : f32 to vector<8x128xf32>
    %11 = arith.addf %10, %9 : vector<8x128xf32>
    %12 = math.log %11 : vector<8x128xf32>
    %cst_7 = arith.constant 0.000000e+00 : f32
    %13 = vector.broadcast %cst_7 : f32 to vector<8x128xf32>
    %14 = arith.subf %13, %3 : vector<8x128xf32>
    %cst_8 = arith.constant 0.000000e+00 : f32
    %15 = vector.broadcast %cst_8 : f32 to vector<8x128xf32>
    %16 = arith.maximumf %14, %15 : vector<8x128xf32>
    %17 = arith.addf %16, %12 : vector<8x128xf32>
    %cst_9 = arith.constant 0.000000e+00 : f32
    %18 = vector.broadcast %cst_9 : f32 to vector<8x128xf32>
    %19 = arith.maximumf %3, %18 : vector<8x128xf32>
    %20 = arith.addf %19, %12 : vector<8x128xf32>
    %cst_10 = arith.constant 1.000000e+02 : f32
    %21 = vector.broadcast %cst_10 : f32 to vector<8x128xf32>
    %22 = arith.minimumf %17, %21 : vector<8x128xf32>
    %23 = arith.mulf %4, %22 : vector<8x128xf32>
    %cst_11 = arith.constant 1.000000e+00 : f32
    %24 = vector.broadcast %cst_11 : f32 to vector<8x128xf32>
    %25 = arith.subf %24, %4 : vector<8x128xf32>
    %cst_12 = arith.constant 1.000000e+02 : f32
    %26 = vector.broadcast %cst_12 : f32 to vector<8x128xf32>
    %27 = arith.minimumf %20, %26 : vector<8x128xf32>
    %28 = arith.mulf %25, %27 : vector<8x128xf32>
    %29 = arith.addf %23, %28 : vector<8x128xf32>
    %c0_13 = arith.constant 0 : index
    %c0_14 = arith.constant 0 : index
    %30 = vector.load %arg6[%c0_13, %c0_14] : memref<8x128xf32, #tpu.memory_space<vmem>>, vector<8x128xf32>
    %31 = vector.broadcast %5 : vector<8x1xf32> to vector<8x128xf32>
    %32 = arith.mulf %29, %31 : vector<8x128xf32>
    %33 = arith.addf %30, %32 : vector<8x128xf32>
    %c0_15 = arith.constant 0 : index
    %c0_16 = arith.constant 0 : index
    %34 = vector.load %arg6[%c0_15, %c0_16] : memref<8x128xf32, #tpu.memory_space<vmem>>, vector<8x128xf32>
    tpu.vector_store %arg6[%c0_15, %c0_16], %33 {strides = array<i32>} : memref<8x128xf32, #tpu.memory_space<vmem>>, vector<8x128xf32>,
    %c0_i32_17 = arith.constant 0 : i32
    %35 = arith.cmpi eq, %arg1, %c0_i32_17 : i32
    %36 = arith.extui %35 : i1 to i32
    %c0_i32_18 = arith.constant 0 : i32
    %37 = arith.cmpi ne, %36, %c0_i32_18 : i32
    scf.if %37 {
      %c0_19 = arith.constant 0 : index
      %c0_20 = arith.constant 0 : index
      %38 = vector.load %arg6[%c0_19, %c0_20] : memref<8x128xf32, #tpu.memory_space<vmem>>, vector<8x128xf32>
      %39 = vector.shape_cast %38 : vector<8x128xf32> to vector<1x8x128xf32>
      %cst_21 = arith.constant dense<0.000000e+00> : vector<1xf32>
      %40 = vector.multi_reduction <add>, %39, %cst_21 [1, 2] : vector<1x8x128xf32> to vector<1xf32>
      %41 = vector.shape_cast %40 : vector<1xf32> to vector<1x1x1xf32>
      %42 = vector.extract %41[0, 0, 0] : f32 from vector<1x1x1xf32>
      %43 = tpu.iota {dimensions = array<i32: 1>} : vector<1x8x128xi32>
      %44 = tpu.iota {dimensions = array<i32: 2>} : vector<1x8x128xi32>
      %c0_i32_22 = arith.constant 0 : i32
      %45 = vector.broadcast %c0_i32_22 : i32 to vector<1x8x128xi32>
      %46 = arith.cmpi eq, %43, %45 : vector<1x8x128xi32>
      %c0_i32_23 = arith.constant 0 : i32
      %47 = vector.broadcast %c0_i32_23 : i32 to vector<1x8x128xi32>
      %48 = arith.cmpi eq, %44, %47 : vector<1x8x128xi32>
      %49 = arith.andi %46, %48 : vector<1x8x128xi1>
      %cst_24 = arith.constant 0.000000e+00 : f32
      %50 = vector.broadcast %42 : f32 to vector<1x8x128xf32>
      %51 = vector.broadcast %cst_24 : f32 to vector<1x8x128xf32>
      %52 = arith.select %49, %50, %51 : vector<1x8x128xi1>, vector<1x8x128xf32>
      %c0_25 = arith.constant 0 : index
      %c0_26 = arith.constant 0 : index
      %c0_27 = arith.constant 0 : index
      %53 = vector.load %arg5[%c0_25, %c0_26, %c0_27] : memref<1x8x128xf32, #tpu.memory_space<vmem>>, vector<1x8x128xf32>
      tpu.vector_store %arg5[%c0_25, %c0_26, %c0_27], %52 {strides = array<i32>} : memref<1x8x128xf32, #tpu.memory_space<vmem>>, vector<1x8x128xf32>,
    } else {
    }
    return
  }
  func.func @transform_0(%arg0: i32, %arg1: i32) -> (i32, i32) {
    %c0_i32 = arith.constant 0 : i32
    return %arg0, %arg1 : i32, i32
  }
  func.func @transform_1(%arg0: i32, %arg1: i32) -> (i32, i32) {
    %c0_i32 = arith.constant 0 : i32
    return %arg0, %arg1 : i32, i32
  }
  func.func @transform_2(%arg0: i32, %arg1: i32) -> (i32, i32) {
    %c0_i32 = arith.constant 0 : i32
    %c0_i32_0 = arith.constant 0 : i32
    return %arg0, %c0_i32 : i32, i32
  }
  func.func @transform_3(%arg0: i32, %arg1: i32) -> (i32, i32, i32) {
    %c0_i32 = arith.constant 0 : i32
    %c0_i32_0 = arith.constant 0 : i32
    %c0_i32_1 = arith.constant 0 : i32
    return %arg0, %c0_i32, %c0_i32_0 : i32, i32, i32
  }
}

</mosaic_0001>

<llo_original>
// kernel: tpu_custom_call.1
$region0: #{tpu_custom_call.1}
  #allocation0 [shape = 'u32[]', space=smem, size = 0x4, offset = 0x4, fixed_abs, tag = 'smem constant byte address 0x4 - core index']
  #allocation1 [shape = 'u32[144,128]{1,0:T(1,128)}', space=vmem, size = 0x12000, scoped, tag = 'internal scratch']
  #allocation2 [shape = 'f32[8,128]{1,0:T(8,128)}', space=vmem, size = 0x1000, scoped, tag = 'scratch operand']
  %s0 = inlined_call_operand.vmem [shape: f32[8,128], index: 0, kind: input, shape index: {}]
  %s1 = inlined_call_operand.hbm [shape: f32[8,128], index: 1, kind: input, shape index: {}]
  %s2 = inlined_call_operand.vmem [shape: f32[8,1], index: 2, kind: input, shape index: {}]
  %s3 = inlined_call_operand.hbm [shape: f32[1,8,128], index: 3, kind: output, shape index: {}]
  %s4 = sld [smem:[#allocation0]]
  $region34: #{tpu_custom_call.1} parent=0
    _
  %s6 = ssub.s32 1, %s4
  %s7 = scalar_select 0, %s6, %s4
  $region1: #{tpu_custom_call.1} parent=0
    #allocation3 [shape = 'u8[4096]{0}', space=vmem, size = 0x1000, scoped, tag = 'input window, operand 1, single buffered']
    #allocation4 [shape = 's32[1]{0}', space=sflag, size = 0x4, scoped, tag = 'scoped memory for tpu_custom_call.1']
    #allocation5 [shape = 's32[1]{0}', space=sflag, size = 0x4, scoped, tag = 'scoped memory for tpu_custom_call.1']
    #allocation6 [shape = 'u8[4096]{0}', space=vmem, size = 0x1000, scoped, tag = 'output window, operand 0, single buffered']
    %8 = vsyncpa [#allocation4], 0
    %9 = vsyncpa [#allocation5], 0
    // Predicated region
    $region2: #{tpu_custom_call.1} parent=1 // pred_check
      _
    $region3: #{tpu_custom_call.1} parent=1 // pred_check_branch
      %11 = sbr.rel (0) target = $region5
    $region4: #{tpu_custom_call.1} parent=1 // pred_region
      _
    $region5: #{tpu_custom_call.1} parent=1 // pred_fallthru
      _
    // Predicated region
    $region6: #{tpu_custom_call.1} parent=1 // pred_check
      _
    $region7: #{tpu_custom_call.1} parent=1 // pred_check_branch
      %13 = sbr.rel (0) target = $region9
    $region8: #{tpu_custom_call.1} parent=1 // pred_region
      %s15 = ssub.s32 128, 128
      %16 = vsyncadd [#allocation4], %s15
      %s18 = sshll.u32 [#allocation3], 4
      %s19 = int_to_ptr.vmem [resolvable:$true] %s18
      %21 = dma.hbm_to_vmem [thread:$0]  %s1, 128, %s19, [#allocation4]
    $region9: #{tpu_custom_call.1} parent=1 // pred_fallthru
      _
    // Predicated region
    $region10: #{tpu_custom_call.1} parent=1 // pred_check
      _
    $region11: #{tpu_custom_call.1} parent=1 // pred_check_branch
      %23 = sbr.rel (0) target = $region13
    $region12: #{tpu_custom_call.1} parent=1 // pred_region
      _
    $region13: #{tpu_custom_call.1} parent=1 // pred_fallthru
      _
    // Predicated region
    $region14: #{tpu_custom_call.1} parent=1 // pred_check
      _
    $region15: #{tpu_custom_call.1} parent=1 // pred_check_branch
      %25 = sbr.rel (0) target = $region17
    $region16: #{tpu_custom_call.1} parent=1 // pred_region
      %26 = dma.done [#allocation4], 128
    $region17: #{tpu_custom_call.1} parent=1 // pred_fallthru
      _
    %p27 = scmp.eq.s32.totalorder 0, 0
    // Predicated region
    $region18: #{tpu_custom_call.1} parent=1 // pred_check
      %p28 = pneg %p27
    $region19: #{tpu_custom_call.1} parent=1 // pred_check_branch
      %30 = sbr.rel (%p28) target = $region21
    $region20: #{tpu_custom_call.1} parent=1 // pred_region
      %31 = vst [vmem:[#allocation2] sm:$0xff] 0.0
    $region21: #{tpu_custom_call.1} parent=1 // pred_fallthru
      _
    %v32 = vld [vmem:[%s0] sm:$0xff]
    %v33 = vld [vmem:[#allocation3] sm:$0xff]
    %v34 = vld [vmem:[%s2] sm:$0xff]
    %v35 = vand.u32 2147483647, %v32
    %v36 = vsub.f32 0.0, %v35
    %v37 = vmul.f32 %v36, 1.442695
    %v38 = vpow.pop %v37
    %v39 = vadd.f32 %v38, 1.0
    %v40 = vlog2.pop %v39
    %v41 = vmul.f32 %v40, 0.6931472
    %v42 = vsub.f32 0.0, %v32
    %v43 = vmax.f32 %v42, 0.0
    %v44 = vadd.f32 %v43, %v41
    %v45 = vmax.f32 %v32, 0.0
    %v46 = vadd.f32 %v45, %v41
    %v47 = vmin.f32 %v44, 100.0
    %v48 = vmul.f32 %v33, %v47
    %v49 = vsub.f32 1.0, %v33
    %v50 = vmin.f32 %v46, 100.0
    %v51 = vmul.f32 %v49, %v50
    %v52 = vadd.f32 %v48, %v51
    %v53 = vld [vmem:[#allocation2] sm:$0xff]
    %55 = vset.pattern.permute.xlu0 0
    %56 = vperm.xlu0 %55, %v34
    %v57 = vpop.permute.xlu0 %56
    %v59 = vmul.f32 %v52, %v57
    %v60 = vadd.f32 %v53, %v59
    %61 = vst [vmem:[#allocation2] sm:$0xff] %v60
    // Predicated region
    $region22: #{tpu_custom_call.1} parent=1 // pred_check
      %p62 = pneg %p27
    $region23: #{tpu_custom_call.1} parent=1 // pred_check_branch
      %64 = sbr.rel (%p62) target = $region25
    $region24: #{tpu_custom_call.1} parent=1 // pred_region
      %v65 = vld [vmem:[#allocation2] sm:$0xff]
      %66 = vadd.xlane.f32.xlu0 %v65
      %v67 = vpop.xlane.xlu0 %66
      %v68 = vrot.slane %v67, 4
      %v69 = vadd.f32 %v67, %v68
      %v70 = vrot.slane %v69, 2
      %v71 = vadd.f32 %v69, %v70
      %v72 = vrot.slane %v71, 1
      %v73 = vadd.f32 %v71, %v72
      %s74 = vtos %v73
      %v75 = vlaneseq
      %v76 = vshrl.u32 %v75, 7
      %v77 = vlaneseq
      %v78 = vand.u32 %v77, 127
      %vm79 = vcmp.eq.s32.totalorder %v76, 0
      %vm80 = vcmp.eq.s32.totalorder %v78, 0
      %vm81 = vmand %vm79, %vm80
      %v82 = vstv %s74
      %v83 = vsel %vm81, %v82, 0.0
      %84 = vst [vmem:[#allocation6] sm:$0xff] %v83
    $region25: #{tpu_custom_call.1} parent=1 // pred_fallthru
      _
    // Predicated region
    $region26: #{tpu_custom_call.1} parent=1 // pred_check
      _
    $region27: #{tpu_custom_call.1} parent=1 // pred_check_branch
      %86 = sbr.rel (0) target = $region29
    $region28: #{tpu_custom_call.1} parent=1 // pred_region
      %s88 = ssub.s32 128, 128
      %89 = vsyncadd [#allocation5], %s88
      %s91 = sshll.u32 [#allocation6], 4
      %s92 = int_to_ptr.vmem [resolvable:$true] %s91
      %94 = dma.vmem_to_hbm [thread:$0]  %s92, 128, %s3, [#allocation5]
    $region29: #{tpu_custom_call.1} parent=1 // pred_fallthru
      _
    // Predicated region
    $region30: #{tpu_custom_call.1} parent=1 // pred_check
      _
    $region31: #{tpu_custom_call.1} parent=1 // pred_check_branch
      %96 = sbr.rel (0) target = $region33
    $region32: #{tpu_custom_call.1} parent=1 // pred_region
      %97 = dma.done [#allocation5], 128
    $region33: #{tpu_custom_call.1} parent=1 // pred_fallthru
      _
    %98 = vsyncpa [#allocation4], 1
    %99 = vsyncpa [#allocation5], 1

</llo_original>
